<compile_context>
chip_gen: v5e
topology: v5e:2x2
jax: 0.10.0
libtpu: 0.0.40
codegen_flags: <defaults>
</compile_context>

<pallas_src>
import functools

import jax
import jax.numpy as jnp
from jax.experimental import pallas as pl
from jax.experimental.pallas import tpu as pltpu

_LANE = 128
_SUBLANE = 8


def _round_up(x, m):
    return (x + m - 1) // m * m


# ---------------------------------------------------------------------------
# Kernels
# ---------------------------------------------------------------------------

def _ea_kernel_single(x_ref, wk_ref, wv_ref, o_ref, *, mxu_dtype):
    """Single pass: the whole hidden dim H is consumed in one grid step."""
    bt, n, d_in = x_ref.shape
    d_out = o_ref.shape[-1]

    # attn = Mk(x): fold (bt, n) rows so the MXU sees one tall 2-D matmul.
    x2 = x_ref[...].reshape(bt * n, d_in)
    wk = wk_ref[...]
    if mxu_dtype is not None:                       # opt-in bf16 MXU operands
        x2, wk = x2.astype(mxu_dtype), wk.astype(mxu_dtype)
    s = jnp.dot(x2, wk, preferred_element_type=jnp.float32).reshape(bt, n, -1)

    # Softmax over the sequence axis (dim=-2), f32, exact denominator.
    m = jnp.max(s, axis=1, keepdims=True)
    e = jnp.exp(s - m)
    p = e / jnp.sum(e, axis=1, keepdims=True)
    # attn_drop: identity in eval mode.
    # TODO(synk): training-mode dropout via pltpu.prng_seed / prng_random_bits.
    p2 = p.reshape(bt * n, -1)

    # Deferred row-normalization: scale (P @ Wv) by 1/(1e-9 + sum_H P) per row.
    rsum = jnp.sum(p2, axis=1, keepdims=True)
    wv = wv_ref[...]
    mm_dtype = mxu_dtype if mxu_dtype is not None else wv.dtype
    out = jnp.dot(p2.astype(mm_dtype), wv.astype(mm_dtype),
                  preferred_element_type=jnp.float32)
    out = out * pl.reciprocal(1e-9 + rsum, approx=True)          # EUP slot
    o_ref[...] = out.reshape(bt, n, d_out).astype(o_ref.dtype)


def _ea_kernel_tiled(x_ref, wk_ref, wv_ref, o_ref, acc_ref, *, d_real, mxu_dtype):
    """H-tiled: grid = (batch tiles [parallel], hidden tiles [arbitrary])."""
    h = pl.program_id(1)

    @pl.when(h == 0)
    def _init():
        acc_ref[...] = jnp.zeros_like(acc_ref)

    bt, n, d_in = x_ref.shape
    d_out = o_ref.shape[-1]

    x2 = x_ref[...].reshape(bt * n, d_in)
    wk = wk_ref[...]
    if mxu_dtype is not None:
        x2, wk = x2.astype(mxu_dtype), wk.astype(mxu_dtype)
    s = jnp.dot(x2, wk, preferred_element_type=jnp.float32).reshape(bt, n, -1)

    # Softmax over N: each (batch, hidden) column is independent, so H-tiling is exact.
    m = jnp.max(s, axis=1, keepdims=True)
    e = jnp.exp(s - m)
    p = (e / jnp.sum(e, axis=1, keepdims=True)).reshape(bt * n, -1)
    # attn_drop: identity in eval mode.
    # TODO(synk): training-mode dropout via pltpu.prng_seed / prng_random_bits.

    wv = wv_ref[...]
    mm_dtype = mxu_dtype if mxu_dtype is not None else wv.dtype
    # Column `d_real` of the padded Wv is all ones, so the same MXU pass also
    # accumulates sum_H(P) per row (no separate rsum scratch / XLU reduce).
    acc_ref[...] += jnp.dot(p.astype(mm_dtype), wv.astype(mm_dtype),
                            preferred_element_type=jnp.float32)

    @pl.when(h == pl.num_programs(1) - 1)
    def _finalize():
        acc = acc_ref[...]
        rsum = acc[:, d_real:d_real + 1]
        out = acc * pl.reciprocal(1e-9 + rsum, approx=True)      # EUP slot
        o_ref[...] = out.reshape(bt, n, d_out).astype(o_ref.dtype)


# ---------------------------------------------------------------------------
# Sizing heuristics
# ---------------------------------------------------------------------------

def _tpu_vmem_caps():
    """(physical VMEM bytes, soft budget used for tiling and vmem_limit_bytes)."""
    try:
        phys = int(pltpu.get_tpu_info().vmem_capacity_bytes)
    except Exception:
        phys = 64 << 20                    # conservative default (v7x-class)
    if phys <= (64 << 20):                 # v7x: 64 MiB per TensorCore
        budget = 44 << 20
    else:                                  # v5e / v6e: 128 MiB
        budget = 100 << 20
    return phys, budget


def _num_tensorcores():
    """v7x exposes 2 TensorCores per chip; v5e/v6e have 1."""
    try:
        kind = (jax.devices()[0].device_kind or "").lower()
    except Exception:
        return 1
    return 2 if "v7" in kind else 1


def _estimate_vmem(bt, th, n, d_in_pad, d_out_pad,
                   x_isz, wk_isz, wv_isz, out_isz, tiled):
    rows = bt * n
    need = rows * d_in_pad * x_isz * (1 if tiled else 2)  # x block (Buffered(1) when tiled)
    need += 2 * d_in_pad * th * wk_isz                    # Wk tile (double-buffered)
    need += 2 * th * d_out_pad * wv_isz                   # Wv tile (double-buffered)
    need += 2 * rows * d_out_pad * out_isz                # output block (double-buffered)
    need += 3 * rows * th * 4                             # softmax temporaries s/e/p (f32)
    need += rows * d_out_pad * 4                          # f32 matmul result / epilogue temp
    if tiled:
        need += rows * d_out_pad * 4                      # resident f32 accumulator scratch
    return int(need * 1.25)                               # layout / compiler headroom


# ---------------------------------------------------------------------------
# Wrapper
# ---------------------------------------------------------------------------

def external_attention(x, wk, wv, *, batch_tile=None, hidden_tile=None,
                       mxu_dtype=None):
    """ExternalAttention forward (eval mode).

    x: (B, N, D), wk: (D, H) (= Mk.weight.T), wv: (H, D) (= Mv.weight.T) -> (B, N, D).

    The batch axis is the parallel grid axis (kept at extent >= 2 on v7x so both
    TensorCores are used); H is either consumed in a single pass (preferred) or
    tiled as the innermost reduction axis with deferred row-normalization.  Tile
    sizes come from a generation-aware VMEM budget.  Set mxu_dtype=jnp.bfloat16
    to run the matmuls with bf16 operands / f32 accumulation on f32 inputs.

    Note: for tiny problems (batch_tile*N below a few hundred rows) per-call and
    per-step overhead dominates and a plain XLA einsum will be faster; this
    kernel targets larger B*N.
    """
    B, N, D = x.shape
    Dk, H = wk.shape
    assert Dk == D and wv.shape == (H, D)

    # Folding (bt, N) rows into one MXU LHS is a free relayout only when N is a
    # multiple of the packed sublane count of the stored dtype
    # (f32: 8, bf16: 16, int8/fp8: 32).
    x_isz = jnp.dtype(x.dtype).itemsize
    wk_isz = jnp.dtype(wk.dtype).itemsize
    wv_isz = jnp.dtype(wv.dtype).itemsize
    pack = max(1, 4 // x_isz)
    assert N % (_SUBLANE * pack) == 0, (
        f"N must be a multiple of {_SUBLANE * pack} for dtype {x.dtype}")

    d_in_pad = _round_up(D, _LANE)
    d_out_single = _round_up(D, _LANE)
    d_out_tiled = _round_up(D + 1, _LANE)   # keep a spare lane for the ones column

    phys_vmem, budget = _tpu_vmem_caps()
    min_splits = _num_tensorcores()

    # ---- tile selection ----------------------------------------------------
    # th candidates: full H first (single pass, fewest reduction steps), then
    # deep multiples of 128 (K >= 256 feeds the 256-deep MXU on v6e/v7x).
    th_cands = [H]
    if H % _LANE == 0:
        th_cands += [t for t in (512, 384, 256, 128) if t < H and H % t == 0]
    th_list = [hidden_tile] if hidden_tile is not None else th_cands

    def need_for(bt_c, th_c):
        t = th_c != H
        d_out = d_out_tiled if t else d_out_single
        return _estimate_vmem(bt_c, th_c, N, d_in_pad, d_out,
                              x_isz, wk_isz, wv_isz, x_isz, t)

    bt_divs = [d for d in range(B, 0, -1) if B % d == 0]
    bt_cands = ([batch_tile] if batch_tile is not None
                else ([d for d in bt_divs if B // d >= min_splits] or bt_divs))

    bt, th = bt_cands[-1], th_list[-1]      # smallest-footprint fallback
    for bt_c in bt_cands:                   # maximize bt, then th, within budget
        hit = next((t for t in th_list if need_for(bt_c, t) <= budget), None)
        if hit is not None:
            bt, th = bt_c, hit
            break

    assert B % bt == 0, "batch_tile must divide B"
    assert H % th == 0 and (th == H or th % _LANE == 0), (
        "hidden_tile must divide H and be a multiple of 128 (or equal H)")

    tiled = th != H
    d_out_pad = d_out_tiled if tiled else d_out_single
    need = need_for(bt, th)
    cap = budget if need <= budget else max(
        budget, min(need + (2 << 20), phys_vmem - (8 << 20)))
    vmem_limit = int(min(max(need + (2 << 20), 16 << 20), cap))

    # ---- lane-dense padding (unmasked full-lane loads/stores) ----------------
    if d_in_pad != D:
        x_in = jnp.pad(x, ((0, 0), (0, 0), (0, d_in_pad - D)))
        wk_in = jnp.pad(wk, ((0, d_in_pad - D), (0, 0)))
    else:
        x_in, wk_in = x, wk
    wv_in = jnp.pad(wv, ((0, 0), (0, d_out_pad - D))) if d_out_pad != D else wv
    if tiled:
        # Fold the row-sum into the second matmul: P @ [Wv | 1] also yields sum_H(P).
        wv_in = wv_in.at[:, D].set(jnp.asarray(1.0, wv_in.dtype))

    # ---- cost estimate (helps XLA overlap neighboring ops) -------------------
    flops = 2 * B * N * d_in_pad * H + 2 * B * N * H * d_out_pad
    transcendentals = B * N * H
    bytes_accessed = (x_in.size * x_isz + B * N * d_out_pad * x_isz
                      + (B // bt) * (wk_in.size * wk_isz + wv_in.size * wv_isz))
    cost = pl.CostEstimate(flops=int(flops), transcendentals=int(transcendentals),
                           bytes_accessed=int(bytes_accessed))

    if not tiled:
        out_pad = pl.pallas_call(
            functools.partial(_ea_kernel_single, mxu_dtype=mxu_dtype),
            out_shape=jax.ShapeDtypeStruct((B, N, d_out_pad), x.dtype),
            grid_spec=pltpu.PrefetchScalarGridSpec(
                num_scalar_prefetch=0,
                grid=(B // bt,),
                in_specs=[
                    pl.BlockSpec((bt, N, d_in_pad), lambda i: (i, 0, 0)),
                    pl.BlockSpec((d_in_pad, H), lambda i: (0, 0)),
                    pl.BlockSpec((H, d_out_pad), lambda i: (0, 0)),
                ],
                out_specs=pl.BlockSpec((bt, N, d_out_pad), lambda i: (i, 0, 0)),
            ),
            compiler_params=pltpu.CompilerParams(
                dimension_semantics=("parallel",),
                vmem_limit_bytes=vmem_limit,
            ),
            cost_estimate=cost,
        )(x_in, wk_in, wv_in)
    else:
        def run_tiled(single_buffer_x):
            spec_kwargs = {}
            if single_buffer_x:
                # x's block index is independent of the h (reduction) axis, so it
                # is resident across the inner loop and never needs a 2nd buffer.
                spec_kwargs["pipeline_mode"] = pl.Buffered(1)
            x_spec = pl.BlockSpec((bt, N, d_in_pad), lambda i, h: (i, 0, 0),
                                  **spec_kwargs)
            return pl.pallas_call(
                functools.partial(_ea_kernel_tiled, d_real=D, mxu_dtype=mxu_dtype),
                out_shape=jax.ShapeDtypeStruct((B, N, d_out_pad), x.dtype),
                grid_spec=pltpu.PrefetchScalarGridSpec(
                    num_scalar_prefetch=0,
                    grid=(B // bt, H // th),
                    in_specs=[
                        x_spec,
                        pl.BlockSpec((d_in_pad, th), lambda i, h: (0, h)),
                        pl.BlockSpec((th, d_out_pad), lambda i, h: (h, 0)),
                    ],
                    out_specs=pl.BlockSpec((bt, N, d_out_pad),
                                           lambda i, h: (i, 0, 0)),
                    scratch_shapes=[pltpu.VMEM((bt * N, d_out_pad), jnp.float32)],
                ),
                compiler_params=pltpu.CompilerParams(
                    dimension_semantics=("parallel", "arbitrary"),
                    vmem_limit_bytes=vmem_limit,
                ),
                cost_estimate=cost,
            )(x_in, wk_in, wv_in)

        try:
            out_pad = run_tiled(single_buffer_x=True)
        except Exception:
            # Fallback if single-buffering via pl.Buffered(1) is unsupported.
            out_pad = run_tiled(single_buffer_x=False)

    return out_pad[..., :D] if d_out_pad != D else out_pad


def external_attention_ref(x, wk, wv):
    """Pure-JAX reference matching the PyTorch forward (eval mode)."""
    attn = jnp.einsum("bnd,dh->bnh", x, wk)
    attn = jax.nn.softmax(attn, axis=-2)
    attn = attn / (1e-9 + jnp.sum(attn, axis=-1, keepdims=True))
    return jnp.einsum("bnh,hd->bnd", attn, wv)


if __name__ == "__main__":
    # Small shapes consistent with the module: batch=2, seq=8, input_size=32, hidden=64.
    B, N, D_IN, HIDDEN = 2, 8, 32, 64

    key = jax.random.PRNGKey(0)
    kx, kk, kv, kk2, kv2 = jax.random.split(key, 5)

    x = jax.random.normal(kx, (B, N, D_IN), dtype=jnp.float32)
    # nn.Linear init_weights: normal(std=0.001), no bias.
    # Mk.weight is (hidden, input) -> stored transposed as (input, hidden).
    wk = 0.001 * jax.random.normal(kk, (D_IN, HIDDEN), dtype=jnp.float32)
    # Mv.weight is (input, hidden) -> stored transposed as (hidden, input).
    wv = 0.001 * jax.random.normal(kv, (HIDDEN, D_IN), dtype=jnp.float32)

    out = jax.block_until_ready(external_attention(x, wk, wv))
    ref = external_attention_ref(x, wk, wv)
    assert out.shape == (B, N, D_IN)
    # approx reciprocal (EUP) for the final row-normalization -> ~1e-3 rel. error.
    assert jnp.allclose(out, ref, atol=1e-5, rtol=5e-3), "single-pass path mismatch"

    # Also exercise the H-tiled reduction path (hidden_tile must be a multiple of 128).
    H2 = 256
    wk2 = 0.001 * jax.random.normal(kk2, (D_IN, H2), dtype=jnp.float32)
    wv2 = 0.001 * jax.random.normal(kv2, (H2, D_IN), dtype=jnp.float32)
    out2 = jax.block_until_ready(external_attention(x, wk2, wv2, hidden_tile=128))
    ref2 = external_attention_ref(x, wk2, wv2)
    assert out2.shape == (B, N, D_IN)
    assert jnp.allclose(out2, ref2, atol=1e-5, rtol=5e-3), "H-tiled path mismatch"

    print("KERNEL_OK")
</pallas_src>

<mosaic_0001>
module attributes {stable_mosaic.version = 11 : i64} {
  func.func @_ea_kernel_single(%arg0: i32, %arg1: memref<2x8x128xf32, #tpu.memory_space<vmem>>, %arg2: memref<128x64xf32, #tpu.memory_space<vmem>>, %arg3: memref<64x128xf32, #tpu.memory_space<vmem>>, %arg4: memref<2x8x128xf32, #tpu.memory_space<vmem>>) attributes {dimension_semantics = [#tpu.dimension_semantics<parallel>], iteration_bounds = array<i64: 1>, scalar_prefetch = 0 : i64, scratch_operands = 0 : i64, tpu.core_type = #tpu.core_type<tc>, window_params = [{transform_indices = @transform_0, window_bounds = array<i64: 2, 8, 128>}, {pipeline_mode = #tpu.pipeline_mode<synchronous>, transform_indices = @transform_1, window_bounds = array<i64: 128, 64>}, {pipeline_mode = #tpu.pipeline_mode<synchronous>, transform_indices = @transform_2, window_bounds = array<i64: 64, 128>}, {transform_indices = @transform_3, window_bounds = array<i64: 2, 8, 128>}]} {
    %c0 = arith.constant 0 : index
    %c0_0 = arith.constant 0 : index
    %c0_1 = arith.constant 0 : index
    %0 = vector.load %arg1[%c0, %c0_0, %c0_1] : memref<2x8x128xf32, #tpu.memory_space<vmem>>, vector<2x8x128xf32>
    %1 = vector.shape_cast %0 : vector<2x8x128xf32> to vector<16x128xf32>
    %c0_2 = arith.constant 0 : index
    %c0_3 = arith.constant 0 : index
    %2 = vector.load %arg2[%c0_2, %c0_3] : memref<128x64xf32, #tpu.memory_space<vmem>>, vector<128x64xf32>
    %cst = arith.constant dense<0.000000e+00> : vector<16x64xf32>
    %3 = tpu.matmul %1, %2, %cst {dimension_numbers = #tpu.dot_dimension_numbers<[1], [0], [0], [1], [0, 0, 1, 1], [], []>} : vector<16x128xf32>, vector<128x64xf32>, vector<16x64xf32> -> vector<16x64xf32>
    %4 = vector.shape_cast %3 : vector<16x64xf32> to vector<2x8x64xf32>
    %cst_4 = arith.constant dense<0xFF800000> : vector<2x64xf32>
    %5 = vector.multi_reduction <maximumf>, %4, %cst_4 [1] : vector<2x8x64xf32> to vector<2x64xf32>
    %6 = vector.shape_cast %5 : vector<2x64xf32> to vector<2x1x64xf32>
    %7 = vector.broadcast %6 : vector<2x1x64xf32> to vector<2x8x64xf32>
    %8 = arith.subf %4, %7 : vector<2x8x64xf32>
    %9 = math.exp %8 : vector<2x8x64xf32>
    %cst_5 = arith.constant dense<0.000000e+00> : vector<2x64xf32>
    %10 = vector.multi_reduction <add>, %9, %cst_5 [1] : vector<2x8x64xf32> to vector<2x64xf32>
    %11 = vector.shape_cast %10 : vector<2x64xf32> to vector<2x1x64xf32>
    %12 = vector.broadcast %11 : vector<2x1x64xf32> to vector<2x8x64xf32>
    %13 = arith.divf %9, %12 : vector<2x8x64xf32>
    %14 = vector.shape_cast %13 : vector<2x8x64xf32> to vector<16x64xf32>
    %cst_6 = arith.constant dense<0.000000e+00> : vector<16xf32>
    %15 = vector.multi_reduction <add>, %14, %cst_6 [1] : vector<16x64xf32> to vector<16xf32>
    %16 = vector.shape_cast %15 : vector<16xf32> to vector<16x1xf32>
    %c0_7 = arith.constant 0 : index
    %c0_8 = arith.constant 0 : index
    %17 = vector.load %arg3[%c0_7, %c0_8] : memref<64x128xf32, #tpu.memory_space<vmem>>, vector<64x128xf32>
    %cst_9 = arith.constant dense<0.000000e+00> : vector<16x128xf32>
    %18 = tpu.matmul %14, %17, %cst_9 {dimension_numbers = #tpu.dot_dimension_numbers<[1], [0], [0], [1], [0, 0, 1, 1], [], []>} : vector<16x64xf32>, vector<64x128xf32>, vector<16x128xf32> -> vector<16x128xf32>
    %cst_10 = arith.constant 9.99999971E-10 : f32
    %19 = vector.broadcast %cst_10 : f32 to vector<16x1xf32>
    %20 = arith.addf %19, %16 : vector<16x1xf32>
    %21 = tpu.reciprocal %20 {approx = true} : vector<16x1xf32> -> vector<16x1xf32>
    %22 = vector.broadcast %21 : vector<16x1xf32> to vector<16x128xf32>
    %23 = arith.mulf %18, %22 : vector<16x128xf32>
    %24 = vector.shape_cast %23 : vector<16x128xf32> to vector<2x8x128xf32>
    %c0_11 = arith.constant 0 : index
    %c0_12 = arith.constant 0 : index
    %c0_13 = arith.constant 0 : index
    %25 = vector.load %arg4[%c0_11, %c0_12, %c0_13] : memref<2x8x128xf32, #tpu.memory_space<vmem>>, vector<2x8x128xf32>
    tpu.vector_store %arg4[%c0_11, %c0_12, %c0_13], %24 {strides = array<i32>} : memref<2x8x128xf32, #tpu.memory_space<vmem>>, vector<2x8x128xf32>,
    return
  }
  func.func @transform_0(%arg0: i32) -> (i32, i32, i32) {
    %c0_i32 = arith.constant 0 : i32
    %c0_i32_0 = arith.constant 0 : i32
    %c0_i32_1 = arith.constant 0 : i32
    return %arg0, %c0_i32, %c0_i32_0 : i32, i32, i32
  }
  func.func @transform_1(%arg0: i32) -> (i32, i32) {
    %c0_i32 = arith.constant 0 : i32
    %c0_i32_0 = arith.constant 0 : i32
    %c0_i32_1 = arith.constant 0 : i32
    return %c0_i32, %c0_i32_0 : i32, i32
  }
  func.func @transform_2(%arg0: i32) -> (i32, i32) {
    %c0_i32 = arith.constant 0 : i32
    %c0_i32_0 = arith.constant 0 : i32
    %c0_i32_1 = arith.constant 0 : i32
    return %c0_i32, %c0_i32_0 : i32, i32
  }
  func.func @transform_3(%arg0: i32) -> (i32, i32, i32) {
    %c0_i32 = arith.constant 0 : i32
    %c0_i32_0 = arith.constant 0 : i32
    %c0_i32_1 = arith.constant 0 : i32
    return %arg0, %c0_i32, %c0_i32_0 : i32, i32, i32
  }
}

</mosaic_0001>

<llo_original>
// kernel: tpu_custom_call.1
$region0: #{tpu_custom_call.1}
  #allocation0 [shape = 'u32[]', space=smem, size = 0x4, offset = 0x4, fixed_abs, tag = 'smem constant byte address 0x4 - core index']
  #allocation1 [shape = 'u32[72,128]{1,0:T(1,128)}', space=vmem, size = 0x9000, scoped, tag = 'internal scratch']
  %s0 = inlined_call_operand.vmem [shape: f32[2,8,128], index: 0, kind: input, shape index: {}]
  %s1 = inlined_call_operand.vmem [shape: f32[128,64], index: 1, kind: input, shape index: {}]
  %s2 = inlined_call_operand.vmem [shape: f32[64,128], index: 2, kind: input, shape index: {}]
  %s3 = inlined_call_operand.hbm [shape: f32[2,8,128], index: 3, kind: output, shape index: {}]
  %s4 = sld [smem:[#allocation0]]
  $region22: #{tpu_custom_call.1} parent=0
    _
  %s6 = ssub.s32 1, %s4
  %s7 = scalar_select 0, %s6, %s4
  $region1: #{tpu_custom_call.1} parent=0
    #allocation2 [shape = 'u8[8192]{0}', space=vmem, size = 0x2000, scoped, tag = 'output window, operand 0, single buffered']
    #allocation3 [shape = 's32[1]{0}', space=sflag, size = 0x4, scoped, tag = 'scoped memory for tpu_custom_call.1']
    %8 = vsyncpa [#allocation3], 0
    // Predicated region
    $region2: #{tpu_custom_call.1} parent=1 // pred_check
      _
    $region3: #{tpu_custom_call.1} parent=1 // pred_check_branch
      %10 = sbr.rel (0) target = $region5
    $region4: #{tpu_custom_call.1} parent=1 // pred_region
      _
    $region5: #{tpu_custom_call.1} parent=1 // pred_fallthru
      _
    // Predicated region
    $region6: #{tpu_custom_call.1} parent=1 // pred_check
      _
    $region7: #{tpu_custom_call.1} parent=1 // pred_check_branch
      %12 = sbr.rel (0) target = $region9
    $region8: #{tpu_custom_call.1} parent=1 // pred_region
      _
    $region9: #{tpu_custom_call.1} parent=1 // pred_fallthru
      _
    // Predicated region
    $region10: #{tpu_custom_call.1} parent=1 // pred_check
      _
    $region11: #{tpu_custom_call.1} parent=1 // pred_check_branch
      %14 = sbr.rel (0) target = $region13
    $region12: #{tpu_custom_call.1} parent=1 // pred_region
      _
    $region13: #{tpu_custom_call.1} parent=1 // pred_fallthru
      _
    %v15 = vld [vmem:[%s0] sm:$0xff]
    %v16 = vld [vmem:[%s0 + $0x8] sm:$0xff]
    %v17 = vld [vmem:[%s1] sm:$0xff]
    %v18 = vld [vmem:[%s1 + $0x8] sm:$0xff]
    %v19 = vld [vmem:[%s1 + $0x10] sm:$0xff]
    %v20 = vld [vmem:[%s1 + $0x18] sm:$0xff]
    %v21 = vld [vmem:[%s1 + $0x20] sm:$0xff]
    %v22 = vld [vmem:[%s1 + $0x28] sm:$0xff]
    %v23 = vld [vmem:[%s1 + $0x30] sm:$0xff]
    %v24 = vld [vmem:[%s1 + $0x38] sm:$0xff]
    %v25 = vld [vmem:[%s1 + $0x40] sm:$0xff]
    %v26 = vld [vmem:[%s1 + $0x48] sm:$0xff]
    %v27 = vld [vmem:[%s1 + $0x50] sm:$0xff]
    %v28 = vld [vmem:[%s1 + $0x58] sm:$0xff]
    %v29 = vld [vmem:[%s1 + $0x60] sm:$0xff]
    %v30 = vld [vmem:[%s1 + $0x68] sm:$0xff]
    %v31 = vld [vmem:[%s1 + $0x70] sm:$0xff]
    %v32 = vld [vmem:[%s1 + $0x78] sm:$0xff]
    %33 = vmatpush.msra.mxu0 %v32
    %34 = vmatpush.msra.mxu0 %v31
    %35 = vmatpush.msra.mxu0 %v30
    %36 = vmatpush.msra.mxu0 %v29
    %37 = vmatpush.msra.mxu0 %v28
    %38 = vmatpush.msra.mxu0 %v27
    %39 = vmatpush.msra.mxu0 %v26
    %40 = vmatpush.msra.mxu0 %v25
    %41 = vmatpush.msra.mxu0 %v24
    %42 = vmatpush.msra.mxu0 %v23
    %43 = vmatpush.msra.mxu0 %v22
    %44 = vmatpush.msra.mxu0 %v21
    %45 = vmatpush.msra.mxu0 %v20
    %46 = vmatpush.msra.mxu0 %v19
    %47 = vmatpush.msra.mxu0 %v18
    %48 = vmatpush.msra.mxu0 %v17
    %49 = vmatmul.f32.gmra.mxu0 %v15
    %v50 = vpop.f32.mrf.mxu0
    %v51 = vadd.f32 0.0, %v50
    %52 = vmatmul.f32.gmra.mxu0 %v16
    %v53 = vpop.f32.mrf.mxu0
    %v54 = vadd.f32 0.0, %v53
    %55 = vdwg.mxu0
    %vm56 = vcmask 523264
    %v57 = vsel %vm56, %v51, -inf
    %v58 = vrot.slane %v57, 4
    %v59 = vmax.f32 %v57, %v58
    %v60 = vrot.slane %v59, 2
    %v61 = vmax.f32 %v59, %v60
    %v62 = vrot.slane %v61, 1
    %v63 = vmax.f32 %v61, %v62
    %v64 = vsel %vm56, %v54, -inf
    %v65 = vrot.slane %v64, 4
    %v66 = vmax.f32 %v64, %v65
    %v67 = vrot.slane %v66, 2
    %v68 = vmax.f32 %v66, %v67
    %v69 = vrot.slane %v68, 1
    %v70 = vmax.f32 %v68, %v69
    %v71 = vsub.f32 %v51, %v63
    %v72 = vsub.f32 %v54, %v70
    %v73 = vmul.f32 %v71, 1.442695
    %v74 = vpow.pop %v73
    %v75 = vmul.f32 %v72, 1.442695
    %v76 = vpow.pop %v75
    %v77 = vsel %vm56, %v74, 0.0
    %v78 = vrot.slane %v77, 4
    %v79 = vadd.f32 %v77, %v78
    %v80 = vrot.slane %v79, 2
    %v81 = vadd.f32 %v79, %v80
    %v82 = vrot.slane %v81, 1
    %v83 = vadd.f32 %v81, %v82
    %v84 = vsel %vm56, %v76, 0.0
    %v85 = vrot.slane %v84, 4
    %v86 = vadd.f32 %v84, %v85
    %v87 = vrot.slane %v86, 2
    %v88 = vadd.f32 %v86, %v87
    %v89 = vrot.slane %v88, 1
    %v90 = vadd.f32 %v88, %v89
    %v91 = vrcp.pop %v83
    %v92 = vmul.f32 %v83, %v91
    %v93 = vsub.f32 1.0, %v92
    %v94 = vmul.f32 %v91, %v93
    %v95 = vadd.f32 %v91, %v94
    %vm96 = vweird.f32 %v83
    %vm97 = vweird.f32 %v91
    %vm98 = vmor %vm96, %vm97
    %v99 = vsel %vm98, %v91, %v95
    %v100 = vand.u32 2147483647, %v83
    %vm101 = vcmp.eq.f32.partialorder %v100, 8.507059e+37
    %v102 = vand.u32 %v83, 2147483648
    %v103 = vor.u32 1.1754944e-38, %v102
    %v104 = vsel %vm101, %v103, %v99
    %v105 = vmul.f32 %v74, %v104
    %v106 = vrcp.pop %v90
    %v107 = vmul.f32 %v90, %v106
    %v108 = vsub.f32 1.0, %v107
    %v109 = vmul.f32 %v106, %v108
    %v110 = vadd.f32 %v106, %v109
    %vm111 = vweird.f32 %v90
    %vm112 = vweird.f32 %v106
    %vm113 = vmor %vm111, %vm112
    %v114 = vsel %vm113, %v106, %v110
    %v115 = vand.u32 2147483647, %v90
    %vm116 = vcmp.eq.f32.partialorder %v115, 8.507059e+37
    %v117 = vand.u32 %v90, 2147483648
    %v118 = vor.u32 1.1754944e-38, %v117
    %v119 = vsel %vm116, %v118, %v114
    %v120 = vmul.f32 %v76, %v119
    %v121 = vsel %vm56, %v105, 0.0
    %122 = vadd.xlane.f32.xlu0 %v121
    %v123 = vpop.xlane.xlu0 %122
    %v124 = vsel %vm56, %v120, 0.0
    %125 = vadd.xlane.f32.xlu0 %v124
    %v126 = vpop.xlane.xlu0 %125
    %v127 = vld [vmem:[%s2] sm:$0xff]
    %v128 = vld [vmem:[%s2 + $0x8] sm:$0xff]
    %v129 = vld [vmem:[%s2 + $0x10] sm:$0xff]
    %v130 = vld [vmem:[%s2 + $0x18] sm:$0xff]
    %v131 = vld [vmem:[%s2 + $0x20] sm:$0xff]
    %v132 = vld [vmem:[%s2 + $0x28] sm:$0xff]
    %v133 = vld [vmem:[%s2 + $0x30] sm:$0xff]
    %v134 = vld [vmem:[%s2 + $0x38] sm:$0xff]
    %v136 = vsel %vm56, %v105, 0
    %v139 = vsel %vm56, %v120, 0
    %141 = vmatpush.msra.mxu0 0.0
    %142 = vmatpush.msra.mxu0 0.0
    %143 = vmatpush.msra.mxu0 0.0
    %144 = vmatpush.msra.mxu0 0.0
    %145 = vmatpush.msra.mxu0 0.0
    %146 = vmatpush.msra.mxu0 0.0
    %147 = vmatpush.msra.mxu0 0.0
    %148 = vmatpush.msra.mxu0 0.0
    %149 = vmatpush.msra.mxu0 %v134
    %150 = vmatpush.msra.mxu0 %v133
    %151 = vmatpush.msra.mxu0 %v132
    %152 = vmatpush.msra.mxu0 %v131
    %153 = vmatpush.msra.mxu0 %v130
    %154 = vmatpush.msra.mxu0 %v129
    %155 = vmatpush.msra.mxu0 %v128
    %156 = vmatpush.msra.mxu0 %v127
    %157 = vmatmul.f32.gmra.mxu0 %v136
    %v158 = vpop.f32.mrf.mxu0
    %v159 = vadd.f32 0.0, %v158
    %160 = vmatmul.f32.gmra.mxu0 %v139
    %v161 = vpop.f32.mrf.mxu0
    %v162 = vadd.f32 0.0, %v161
    %163 = vdwg.mxu0
    %v164 = vadd.f32 %v123, 1e-09
    %v165 = vadd.f32 %v126, 1e-09
    %v166 = vrcp.pop %v164
    %v167 = vrcp.pop %v165
    %v168 = vmul.f32 %v159, %v166
    %v169 = vmul.f32 %v162, %v167
    %170 = vst [vmem:[#allocation2] sm:$0xff] %v168
    %171 = vst [vmem:[#allocation2 + $0x8] sm:$0xff] %v169
    // Predicated region
    $region14: #{tpu_custom_call.1} parent=1 // pred_check
      _
    $region15: #{tpu_custom_call.1} parent=1 // pred_check_branch
      %173 = sbr.rel (0) target = $region17
    $region16: #{tpu_custom_call.1} parent=1 // pred_region
      %175 = vsyncadd [#allocation3], 0
      %s176 = sshll.u32 [#allocation2], 4
      %s177 = int_to_ptr.vmem [resolvable:$true] %s176
      %s178 = sshll.u32 %s3, 4
      %s179 = int_to_ptr.hbm [resolvable:$true] %s178
      %184 = dma.vmem_to_hbm [thread:$0]  %s177, 256, %s179, [#allocation3], 128, 128, 8
    $region17: #{tpu_custom_call.1} parent=1 // pred_fallthru
      _
    // Predicated region
    $region18: #{tpu_custom_call.1} parent=1 // pred_check
      _
    $region19: #{tpu_custom_call.1} parent=1 // pred_check_branch
      %186 = sbr.rel (0) target = $region21
    $region20: #{tpu_custom_call.1} parent=1 // pred_region
      %188 = dma.done [#allocation3], 256
    $region21: #{tpu_custom_call.1} parent=1 // pred_fallthru
      _
    %189 = vsyncpa [#allocation3], 1

</llo_original>
